<compile_context>
chip_gen: v6e
topology: v6e:2x2x1
jax: 0.10.0
libtpu: 0.0.40
codegen_flags: <defaults>
</compile_context>

<pallas_src>
import functools

import jax
import jax.numpy as jnp
from jax import lax
from jax.experimental import pallas as pl
from jax.experimental.pallas import tpu as pltpu


_NEG_LARGE = -1000000.0  # fill value used by torch sequence_mask


@functools.lru_cache(maxsize=1)
def _hw_params():
    """Generation-aware budgets (v7x: 64 MiB VMEM + 2 TCs; v5e/v6e: 128 MiB, 1 TC)."""
    vmem_cap = 128 * 1024 * 1024
    try:
        info = pltpu.get_tpu_info()
        cap = getattr(info, "vmem_capacity_bytes", None)
        if cap:
            vmem_cap = int(cap)
    except Exception:
        pass
    small_vmem = vmem_cap <= (64 * 1024 * 1024)
    if small_vmem:          # v7x-like
        return dict(vmem_limit=48 << 20, temp_budget=4 << 20,
                    kv_resident_budget=20 << 20, multi_core=True)
    else:                   # v5e / v6e-like
        return dict(vmem_limit=104 << 20, temp_budget=16 << 20,
                    kv_resident_budget=44 << 20, multi_core=False)


# --------------------------------------------------------------------------------
# Path 1: K/V resident in VMEM across Q tiles (small/medium K, masked or unmasked).
# --------------------------------------------------------------------------------
def _resident_kernel(vl_ref, q_ref, k_ref, v_ref, o_ref, *, inv_sharp, masked, mm_dtype):
    # vl_ref: (tb,1,1) int32 valid lengths (ignored when masked=False)
    # q_ref : (tb,tq,D)   k_ref: (tb,K,D)   v_ref: (tb,K,Dv)   o_ref: (tb,tq,Dv)
    q = q_ref[...]
    if inv_sharp != 1.0:
        q = q * inv_sharp                  # fold 1/sharp into q: O(tq*D) not O(tq*K)
    q = q.astype(mm_dtype)
    k = k_ref[...].astype(mm_dtype)
    v = v_ref[...].astype(mm_dtype)

    # scores: batched contraction over D -> (tb, tq, K), f32 MXU accumulation.
    s = jnp.einsum("bqd,bkd->bqk", q, k, preferred_element_type=jnp.float32)

    if masked:
        # x = F.normalize(s - s.min(-1, keepdim=True), p=2, dim=-1)
        x = s - jnp.min(s, axis=-1, keepdims=True)
        sumsq = jnp.sum(x * x, axis=-1, keepdims=True)
        # rsqrt(max(sumsq,1e-24)) == 1 / max(||x||_2, 1e-12); rsqrt sits on the EUP.
        x = x * lax.rsqrt(jnp.maximum(sumsq, 1e-24))
        col = lax.broadcasted_iota(jnp.int32, x.shape, 2)          # built once per step
        x = jnp.where(col >= vl_ref[...], _NEG_LARGE, x)
        # After L2 normalization x in [0,1]; masked entries are -1e6 (exp underflows
        # to exactly 0) -> no row-max subtraction needed before exp.
        p = jnp.exp(x)
    else:
        p = jnp.exp(s - jnp.max(s, axis=-1, keepdims=True))

    denom = jnp.sum(p, axis=-1, keepdims=True)
    pv = jnp.einsum("bqk,bkd->bqd", p.astype(mm_dtype), v,
                    preferred_element_type=jnp.float32)
    # Deferred softmax normalization: scale the (tq,Dv) result, not the (tq,K) probs.
    o_ref[...] = (pv * pl.reciprocal(denom, approx=True)).astype(o_ref.dtype)


# --------------------------------------------------------------------------------
# Path 2: flash-style K-tiled online softmax (unmasked branch, long K).
# --------------------------------------------------------------------------------
def _flash_kernel(q_ref, k_ref, v_ref, o_ref, m_sc, l_sc, acc_sc, *,
                  inv_sharp, mm_dtype, kv_len, kv_block):
    ki = pl.program_id(2)

    @pl.when(ki == 0)
    def _init():
        m_sc[...] = jnp.full_like(m_sc, -jnp.inf)
        l_sc[...] = jnp.zeros_like(l_sc)
        acc_sc[...] = jnp.zeros_like(acc_sc)

    q = q_ref[...]
    if inv_sharp != 1.0:
        q = q * inv_sharp
    q = q.astype(mm_dtype)
    k = k_ref[...].astype(mm_dtype)
    v = v_ref[...].astype(mm_dtype)

    s = jnp.einsum("bqd,bkd->bqk", q, k, preferred_element_type=jnp.float32)

    if kv_len % kv_block != 0:
        # Mask the padded tail of the last KV block (scores -> -1e30 -> exp = 0) and
        # zero the padded V rows so stale-VMEM NaNs cannot leak through 0 * NaN.
        col = lax.broadcasted_iota(jnp.int32, s.shape, 2) + ki * kv_block
        s = jnp.where(col >= kv_len, -1e30, s)
        row = lax.broadcasted_iota(jnp.int32, v.shape, 1) + ki * kv_block
        v = jnp.where(row >= kv_len, jnp.zeros_like(v), v)

    m_prev = m_sc[...]
    m_new = jnp.maximum(m_prev, jnp.max(s, axis=-1, keepdims=True))
    alpha = jnp.exp(m_prev - m_new)
    p = jnp.exp(s - m_new)
    l_sc[...] = alpha * l_sc[...] + jnp.sum(p, axis=-1, keepdims=True)
    pv = jnp.einsum("bqk,bkd->bqd", p.astype(mm_dtype), v,
                    preferred_element_type=jnp.float32)
    acc_sc[...] = alpha * acc_sc[...] + pv
    m_sc[...] = m_new

    @pl.when(ki == pl.num_programs(2) - 1)
    def _finalize():
        o_ref[...] = (acc_sc[...] * pl.reciprocal(l_sc[...], approx=True)
                      ).astype(o_ref.dtype)


# --------------------------------------------------------------------------------
# Wrapper
# --------------------------------------------------------------------------------
def dot_product_attention(query, key, value, valid_length=None, *, sharp=1.0,
                          dropout=0.0, allow_bf16_matmul=True,
                          q_block=None, kv_block=None, batch_block=None):
    """Pallas TPU implementation of DotProductAttention.forward (dropout p=0 -> identity)."""
    del dropout  # module is built with p=0.0 -> identity; training dropout not implemented
    B, Q, D = query.shape
    Bk, K, Dk = key.shape
    Bv, Kv, Dv = value.shape
    assert (B, D) == (Bk, Dk) and (B, K) == (Bv, Kv)

    itemsize = jnp.dtype(query.dtype).itemsize
    sub = 8 * max(1, 4 // itemsize)            # sublane packing: 8 f32 / 16 bf16 / 32 int8
    hw = _hw_params()

    masked = valid_length is not None
    inv_sharp = 1.0 / float(sharp)
    mm_dtype = query.dtype
    if allow_bf16_matmul and query.dtype == jnp.float32 and D >= 128:
        mm_dtype = jnp.bfloat16                # MXU is natively bf16; f32 acc kept

    flops = 2 * B * Q * K * (D + Dv)
    cost = pl.CostEstimate(
        flops=flops, transcendentals=B * Q * K,
        bytes_accessed=itemsize * B * (Q * D + K * D + K * Dv + Q * Dv))

    kv_bytes_1b = K * (D + Dv) * itemsize      # one batch element of K + V
    use_flash = ((not masked)
                 and (kv_block is not None
                      or 2 * kv_bytes_1b > hw["kv_resident_budget"]))
    # TODO(synk): the masked branch needs the global row-min / row-L2-norm over K,
    # so very long masked sequences still require K/V-resident VMEM (a two-pass
    # K-tiled normalize is not implemented).

    if not use_flash:
        # ---- batch tile: amortize ~0.35us/step overhead for tiny problems. ------
        tb = 1
        if batch_block is not None:
            tb = max(1, min(B, int(batch_block)))
        elif Q <= 256 and K <= 2048:
            per_batch_block_bytes = (Q * D + K * (D + Dv) + Q * Dv) * itemsize
            tb = min(B, 16, max(1, (2 << 20) // max(per_batch_block_bytes, 1)))
            if hw["multi_core"] and B > 1:
                tb = min(tb, max(1, B // 2))   # leave work for the second TensorCore
        while tb > 1 and B % tb:
            tb -= 1
        num_b = B // tb

        # ---- q tile: biggest that keeps ~5 live (tb,tq,K) f32 temporaries in budget.
        if q_block is not None:
            tq = min(Q, int(q_block))
        else:
            tq = min(Q, max(sub, hw["temp_budget"] // max(5 * tb * K * 4, 1)))
        if tq < Q:
            tq = max(sub, (tq // sub) * sub)
        num_q = pl.cdiv(Q, tq)

        # Megacore split must land on the batch axis (K/V are reused across q tiles).
        dims = ("parallel", "arbitrary") if num_b >= 2 else ("parallel", "parallel")

        # K/V blocks only change when bi changes -> single-buffer them when there
        # are multiple q tiles and spend the saved VMEM on larger q tiles.
        kv_kwargs = dict(pipeline_mode=pl.Buffered(1)) if num_q > 1 else {}
        k_spec = pl.BlockSpec((tb, K, D), lambda bi, qi: (bi, 0, 0), **kv_kwargs)
        v_spec = pl.BlockSpec((tb, K, Dv), lambda bi, qi: (bi, 0, 0), **kv_kwargs)

        if masked:
            vl3 = valid_length.astype(jnp.int32).reshape(B, 1, 1)
        else:
            vl3 = jnp.full((B, 1, 1), K, dtype=jnp.int32)   # dummy, unused
        # TODO(synk): 2-D (per-query-row) valid_length from the torch reshape((-1,))
        # branch is not supported; only the common 1-D per-batch form is handled.

        kernel = functools.partial(_resident_kernel, inv_sharp=inv_sharp,
                                   masked=masked, mm_dtype=mm_dtype)
        return pl.pallas_call(
            kernel,
            out_shape=jax.ShapeDtypeStruct((B, Q, Dv), query.dtype),
            grid=(num_b, num_q),
            in_specs=[pl.BlockSpec((tb, 1, 1), lambda bi, qi: (bi, 0, 0)),
                      pl.BlockSpec((tb, tq, D), lambda bi, qi: (bi, qi, 0)),
                      k_spec, v_spec],
            out_specs=pl.BlockSpec((tb, tq, Dv), lambda bi, qi: (bi, qi, 0)),
            compiler_params=pltpu.CompilerParams(
                dimension_semantics=dims,
                vmem_limit_bytes=hw["vmem_limit"]),
            cost_estimate=cost,
        )(vl3, query, key, value)

    # ---- flash-style K-tiled path (unmasked): online softmax over KV blocks. ----
    tk = min(K, int(kv_block)) if kv_block is not None else min(K, 512)
    if tk < K:
        tk = max(sub, (tk // sub) * sub)
    num_k = pl.cdiv(K, tk)

    if q_block is not None:
        tq = min(Q, int(q_block))
    else:
        tq = min(Q, 1024, max(sub, hw["temp_budget"] // max(5 * tk * 4, 1)))
    if tq < Q:
        tq = max(sub, (tq // sub) * sub)
    num_q = pl.cdiv(Q, tq)

    dims = (("parallel", "arbitrary", "arbitrary")
            if (hw["multi_core"] and B >= 2)
            else ("parallel", "parallel", "arbitrary"))

    kernel = functools.partial(_flash_kernel, inv_sharp=inv_sharp, mm_dtype=mm_dtype,
                               kv_len=K, kv_block=tk)
    return pl.pallas_call(
        kernel,
        out_shape=jax.ShapeDtypeStruct((B, Q, Dv), query.dtype),
        grid=(B, num_q, num_k),
        in_specs=[pl.BlockSpec((1, tq, D), lambda bi, qi, ki: (bi, qi, 0)),
                  pl.BlockSpec((1, tk, D), lambda bi, qi, ki: (bi, ki, 0)),
                  pl.BlockSpec((1, tk, Dv), lambda bi, qi, ki: (bi, ki, 0))],
        out_specs=pl.BlockSpec((1, tq, Dv), lambda bi, qi, ki: (bi, qi, 0)),
        scratch_shapes=[pltpu.VMEM((1, tq, 1), jnp.float32),
                        pltpu.VMEM((1, tq, 1), jnp.float32),
                        pltpu.VMEM((1, tq, Dv), jnp.float32)],
        compiler_params=pltpu.CompilerParams(
            dimension_semantics=dims,
            vmem_limit_bytes=hw["vmem_limit"]),
        cost_estimate=cost,
    )(query, key, value)


# --------------------------------------------------------------------------------
# Reference + self-test
# --------------------------------------------------------------------------------
def _reference(query, key, value, valid_length, sharp):
    hi = jax.lax.Precision.HIGHEST
    s = jnp.einsum("bqd,bkd->bqk", query, key, precision=hi) / sharp
    if valid_length is None:
        w = jax.nn.softmax(s, axis=-1)
    else:
        x = s - jnp.min(s, axis=-1, keepdims=True)
        nrm = jnp.sqrt(jnp.sum(x * x, axis=-1, keepdims=True))
        x = x / jnp.maximum(nrm, 1e-12)
        col = jnp.arange(s.shape[-1])[None, None, :]
        x = jnp.where(col >= valid_length[:, None, None], _NEG_LARGE, x)
        w = jax.nn.softmax(x, axis=-1)
    return jnp.einsum("bqk,bkv->bqv", w, value, precision=hi)


if __name__ == "__main__":
    sharp = 1.5
    root = jax.random.PRNGKey(0)

    def check(out, expect, name):
        assert out.shape == expect.shape, (name, out.shape, expect.shape)
        err = float(jnp.max(jnp.abs(out - expect)))
        assert jnp.allclose(out, expect, rtol=2e-2, atol=2e-2), (name, err)

    # Case 1: small masked shapes (typical module usage) -> K/V-resident path.
    kq, kk, kv = jax.random.split(jax.random.fold_in(root, 1), 3)
    B, Q, K, D, Dv = 2, 8, 8, 32, 32
    q1 = jax.random.normal(kq, (B, Q, D), jnp.float32)
    k1 = jax.random.normal(kk, (B, K, D), jnp.float32)
    v1 = jax.random.normal(kv, (B, K, Dv), jnp.float32)
    vl1 = jnp.array([5, 8], jnp.int32)
    o1 = jax.block_until_ready(
        dot_product_attention(q1, k1, v1, vl1, sharp=sharp, dropout=0.0))
    check(o1, _reference(q1, k1, v1, vl1, sharp), "masked-small")

    # Case 2: valid_length=None (plain softmax) on the same shapes.
    o2 = jax.block_until_ready(dot_product_attention(q1, k1, v1, None, sharp=sharp))
    check(o2, _reference(q1, k1, v1, None, sharp), "unmasked-small")

    # Case 3: larger batch, vectorized tb > 1, masked.
    kq, kk, kv, kl = jax.random.split(jax.random.fold_in(root, 3), 4)
    B3 = 8
    q3 = jax.random.normal(kq, (B3, Q, D), jnp.float32)
    k3 = jax.random.normal(kk, (B3, K, D), jnp.float32)
    v3 = jax.random.normal(kv, (B3, K, Dv), jnp.float32)
    vl3 = jax.random.randint(kl, (B3,), 1, K + 1).astype(jnp.int32)
    o3 = jax.block_until_ready(dot_product_attention(q3, k3, v3, vl3, sharp=sharp))
    check(o3, _reference(q3, k3, v3, vl3, sharp), "masked-batch8")

    # Case 4: multiple q tiles with a ragged Q -> exercises Buffered(1) K/V + q padding.
    kq, kk, kv, kl = jax.random.split(jax.random.fold_in(root, 4), 4)
    B4, Q4, K4, D4 = 2, 200, 128, 64
    q4 = jax.random.normal(kq, (B4, Q4, D4), jnp.float32)
    k4 = jax.random.normal(kk, (B4, K4, D4), jnp.float32)
    v4 = jax.random.normal(kv, (B4, K4, D4), jnp.float32)
    vl4 = jax.random.randint(kl, (B4,), 1, K4 + 1).astype(jnp.int32)
    o4 = jax.block_until_ready(
        dot_product_attention(q4, k4, v4, vl4, sharp=sharp, q_block=128))
    check(o4, _reference(q4, k4, v4, vl4, sharp), "masked-qtiled")

    # Case 5: flash-style K-tiled path (unmasked) with a ragged K tail.
    kq, kk, kv = jax.random.split(jax.random.fold_in(root, 5), 3)
    B5, Q5, K5, D5 = 2, 64, 200, 32
    q5 = jax.random.normal(kq, (B5, Q5, D5), jnp.float32)
    k5 = jax.random.normal(kk, (B5, K5, D5), jnp.float32)
    v5 = jax.random.normal(kv, (B5, K5, D5), jnp.float32)
    o5 = jax.block_until_ready(
        dot_product_attention(q5, k5, v5, None, sharp=sharp, kv_block=128))
    check(o5, _reference(q5, k5, v5, None, sharp), "unmasked-flash")

    print("KERNEL_OK")
</pallas_src>

<mosaic_0001>
module attributes {stable_mosaic.version = 11 : i64} {
  func.func @_resident_kernel(%arg0: i32, %arg1: i32, %arg2: memref<2x1x1xi32, #tpu.memory_space<vmem>>, %arg3: memref<2x8x32xf32, #tpu.memory_space<vmem>>, %arg4: memref<2x8x32xf32, #tpu.memory_space<vmem>>, %arg5: memref<2x8x32xf32, #tpu.memory_space<vmem>>, %arg6: memref<2x8x32xf32, #tpu.memory_space<vmem>>) attributes {dimension_semantics = [#tpu.dimension_semantics<parallel>, #tpu.dimension_semantics<parallel>], iteration_bounds = array<i64: 1, 1>, scalar_prefetch = 0 : i64, scratch_operands = 0 : i64, tpu.core_type = #tpu.core_type<tc>, window_params = [{transform_indices = @transform_0, window_bounds = array<i64: 2, 1, 1>}, {transform_indices = @transform_1, window_bounds = array<i64: 2, 8, 32>}, {transform_indices = @transform_2, window_bounds = array<i64: 2, 8, 32>}, {transform_indices = @transform_3, window_bounds = array<i64: 2, 8, 32>}, {transform_indices = @transform_4, window_bounds = array<i64: 2, 8, 32>}]} {
    %c0 = arith.constant 0 : index
    %c0_0 = arith.constant 0 : index
    %c0_1 = arith.constant 0 : index
    %0 = vector.load %arg3[%c0, %c0_0, %c0_1] : memref<2x8x32xf32, #tpu.memory_space<vmem>>, vector<2x8x32xf32>
    %cst = arith.constant 0.666666686 : f32
    %1 = vector.broadcast %cst : f32 to vector<2x8x32xf32>
    %2 = arith.mulf %0, %1 : vector<2x8x32xf32>
    %c0_2 = arith.constant 0 : index
    %c0_3 = arith.constant 0 : index
    %c0_4 = arith.constant 0 : index
    %3 = vector.load %arg4[%c0_2, %c0_3, %c0_4] : memref<2x8x32xf32, #tpu.memory_space<vmem>>, vector<2x8x32xf32>
    %c0_5 = arith.constant 0 : index
    %c0_6 = arith.constant 0 : index
    %c0_7 = arith.constant 0 : index
    %4 = vector.load %arg5[%c0_5, %c0_6, %c0_7] : memref<2x8x32xf32, #tpu.memory_space<vmem>>, vector<2x8x32xf32>
    "tpu.trace_start"() <{level = 10 : i32, message = "bqd,bkd->bqk"}> : () -> ()
    %cst_8 = arith.constant dense<0.000000e+00> : vector<2x8x8xf32>
    %5 = tpu.matmul %2, %3, %cst_8 {dimension_numbers = #tpu.dot_dimension_numbers<[2], [2], [1], [1], [0, 0, 0, 1, 1, 1], [0], [0]>} : vector<2x8x32xf32>, vector<2x8x32xf32>, vector<2x8x8xf32> -> vector<2x8x8xf32>
    "tpu.trace_stop"() : () -> ()
    %cst_9 = arith.constant dense<0x7F800000> : vector<2x8xf32>
    %6 = vector.multi_reduction <minimumf>, %5, %cst_9 [2] : vector<2x8x8xf32> to vector<2x8xf32>
    %7 = vector.shape_cast %6 : vector<2x8xf32> to vector<2x8x1xf32>
    %8 = vector.broadcast %7 : vector<2x8x1xf32> to vector<2x8x8xf32>
    %9 = arith.subf %5, %8 : vector<2x8x8xf32>
    %10 = arith.mulf %9, %9 : vector<2x8x8xf32>
    %cst_10 = arith.constant dense<0.000000e+00> : vector<2x8xf32>
    %11 = vector.multi_reduction <add>, %10, %cst_10 [2] : vector<2x8x8xf32> to vector<2x8xf32>
    %12 = vector.shape_cast %11 : vector<2x8xf32> to vector<2x8x1xf32>
    %cst_11 = arith.constant 1.000000e-24 : f32
    %13 = vector.broadcast %cst_11 : f32 to vector<2x8x1xf32>
    %14 = arith.maximumf %12, %13 : vector<2x8x1xf32>
    %15 = math.rsqrt %14 : vector<2x8x1xf32>
    %16 = vector.broadcast %15 : vector<2x8x1xf32> to vector<2x8x8xf32>
    %17 = arith.mulf %9, %16 : vector<2x8x8xf32>
    %18 = tpu.iota {dimensions = array<i32: 2>} : vector<2x8x8xi32>
    %c0_12 = arith.constant 0 : index
    %c0_13 = arith.constant 0 : index
    %c0_14 = arith.constant 0 : index
    %19 = vector.load %arg2[%c0_12, %c0_13, %c0_14] : memref<2x1x1xi32, #tpu.memory_space<vmem>>, vector<2x1x1xi32>
    %20 = vector.broadcast %19 : vector<2x1x1xi32> to vector<2x8x8xi32>
    %21 = arith.cmpi sge, %18, %20 : vector<2x8x8xi32>
    %cst_15 = arith.constant -1.000000e+06 : f32
    %22 = vector.broadcast %cst_15 : f32 to vector<2x8x8xf32>
    %23 = arith.select %21, %22, %17 : vector<2x8x8xi1>, vector<2x8x8xf32>
    %24 = math.exp %23 : vector<2x8x8xf32>
    %cst_16 = arith.constant dense<0.000000e+00> : vector<2x8xf32>
    %25 = vector.multi_reduction <add>, %24, %cst_16 [2] : vector<2x8x8xf32> to vector<2x8xf32>
    %26 = vector.shape_cast %25 : vector<2x8xf32> to vector<2x8x1xf32>
    "tpu.trace_start"() <{level = 10 : i32, message = "bqk,bkd->bqd"}> : () -> ()
    %cst_17 = arith.constant dense<0.000000e+00> : vector<2x8x32xf32>
    %27 = tpu.matmul %24, %4, %cst_17 {dimension_numbers = #tpu.dot_dimension_numbers<[2], [1], [1], [2], [0, 0, 0, 1, 1, 2], [0], [0]>} : vector<2x8x8xf32>, vector<2x8x32xf32>, vector<2x8x32xf32> -> vector<2x8x32xf32>
    "tpu.trace_stop"() : () -> ()
    %28 = tpu.reciprocal %26 {approx = true} : vector<2x8x1xf32> -> vector<2x8x1xf32>
    %29 = vector.broadcast %28 : vector<2x8x1xf32> to vector<2x8x32xf32>
    %30 = arith.mulf %27, %29 : vector<2x8x32xf32>
    %c0_18 = arith.constant 0 : index
    %c0_19 = arith.constant 0 : index
    %c0_20 = arith.constant 0 : index
    %31 = vector.load %arg6[%c0_18, %c0_19, %c0_20] : memref<2x8x32xf32, #tpu.memory_space<vmem>>, vector<2x8x32xf32>
    tpu.vector_store %arg6[%c0_18, %c0_19, %c0_20], %30 {strides = array<i32>} : memref<2x8x32xf32, #tpu.memory_space<vmem>>, vector<2x8x32xf32>,
    return
  }
  func.func @transform_0(%arg0: i32, %arg1: i32) -> (i32, i32, i32) {
    %c0_i32 = arith.constant 0 : i32
    %c0_i32_0 = arith.constant 0 : i32
    %c0_i32_1 = arith.constant 0 : i32
    return %arg0, %c0_i32, %c0_i32_0 : i32, i32, i32
  }
  func.func @transform_1(%arg0: i32, %arg1: i32) -> (i32, i32, i32) {
    %c0_i32 = arith.constant 0 : i32
    %c0_i32_0 = arith.constant 0 : i32
    return %arg0, %arg1, %c0_i32 : i32, i32, i32
  }
  func.func @transform_2(%arg0: i32, %arg1: i32) -> (i32, i32, i32) {
    %c0_i32 = arith.constant 0 : i32
    %c0_i32_0 = arith.constant 0 : i32
    %c0_i32_1 = arith.constant 0 : i32
    return %arg0, %c0_i32, %c0_i32_0 : i32, i32, i32
  }
  func.func @transform_3(%arg0: i32, %arg1: i32) -> (i32, i32, i32) {
    %c0_i32 = arith.constant 0 : i32
    %c0_i32_0 = arith.constant 0 : i32
    %c0_i32_1 = arith.constant 0 : i32
    return %arg0, %c0_i32, %c0_i32_0 : i32, i32, i32
  }
  func.func @transform_4(%arg0: i32, %arg1: i32) -> (i32, i32, i32) {
    %c0_i32 = arith.constant 0 : i32
    %c0_i32_0 = arith.constant 0 : i32
    return %arg0, %arg1, %c0_i32 : i32, i32, i32
  }
}

</mosaic_0001>

<llo_original>
// kernel: tpu_custom_call.1
$region0: #{tpu_custom_call.1}
  #allocation0 [shape = 'u32[]', space=smem, size = 0x4, offset = 0x4, fixed_abs, tag = 'smem constant byte address 0x4 - core index']
  #allocation1 [shape = 'u32[144,128]{1,0:T(1,128)}', space=vmem, size = 0x12000, scoped, tag = 'internal scratch']
  %s0 = inlined_call_operand.vmem [shape: s32[2,1,1], index: 0, kind: input, shape index: {}]
  %s1 = inlined_call_operand.hbm [shape: f32[2,8,32], index: 1, kind: input, shape index: {}]
  %s2 = inlined_call_operand.hbm [shape: f32[2,8,32], index: 2, kind: input, shape index: {}]
  %s3 = inlined_call_operand.hbm [shape: f32[2,8,32], index: 3, kind: input, shape index: {}]
  %s4 = inlined_call_operand.hbm [shape: f32[2,8,32], index: 4, kind: output, shape index: {}]
  %s5 = sld [smem:[#allocation0]]
  $region38: #{tpu_custom_call.1} parent=0
    _
  %s7 = ssub.s32 1, %s5
  %s8 = scalar_select 0, %s7, %s5
  $region1: #{tpu_custom_call.1} parent=0
    #allocation2 [shape = 'u8[8192]{0}', space=vmem, size = 0x2000, scoped, tag = 'input window, operand 1, single buffered']
    #allocation3 [shape = 's32[1]{0}', space=sflag, size = 0x4, scoped, tag = 'scoped memory for tpu_custom_call.1']
    #allocation4 [shape = 's32[1]{0}', space=sflag, size = 0x4, scoped, tag = 'scoped memory for tpu_custom_call.1']
    #allocation5 [shape = 'u8[8192]{0}', space=vmem, size = 0x2000, scoped, tag = 'input window, operand 2, single buffered']
    #allocation6 [shape = 's32[1]{0}', space=sflag, size = 0x4, scoped, tag = 'scoped memory for tpu_custom_call.1']
    #allocation7 [shape = 'u8[8192]{0}', space=vmem, size = 0x2000, scoped, tag = 'input window, operand 3, single buffered']
    #allocation8 [shape = 'u8[8192]{0}', space=vmem, size = 0x2000, scoped, tag = 'output window, operand 0, single buffered']
    %9 = vsyncpa [#allocation3], 0
    %10 = vsyncpa [#allocation6], 0
    %11 = vsyncpa [#allocation4], 0
    // Predicated region
    $region2: #{tpu_custom_call.1} parent=1 // pred_check
      _
    $region3: #{tpu_custom_call.1} parent=1 // pred_check_branch
      %13 = sbr.rel (0) target = $region5
    $region4: #{tpu_custom_call.1} parent=1 // pred_region
      _
    $region5: #{tpu_custom_call.1} parent=1 // pred_fallthru
      _
    // Predicated region
    $region6: #{tpu_custom_call.1} parent=1 // pred_check
      _
    $region7: #{tpu_custom_call.1} parent=1 // pred_check_branch
      %15 = sbr.rel (0) target = $region9
    $region8: #{tpu_custom_call.1} parent=1 // pred_region
      %s17 = ssub.s32 256, 256
      %18 = vsyncadd [#allocation3], %s17
      %s19 = sshll.u32 [#allocation2], 4
      %s20 = int_to_ptr.vmem [resolvable:$true] %s19
      %25 = dma.hbm_to_vmem [thread:$0]  %s1, 256, %s20, [#allocation3], 128, 128, 8
    $region9: #{tpu_custom_call.1} parent=1 // pred_fallthru
      _
    // Predicated region
    $region10: #{tpu_custom_call.1} parent=1 // pred_check
      _
    $region11: #{tpu_custom_call.1} parent=1 // pred_check_branch
      %27 = sbr.rel (0) target = $region13
    $region12: #{tpu_custom_call.1} parent=1 // pred_region
      %s29 = ssub.s32 256, 256
      %30 = vsyncadd [#allocation6], %s29
      %s31 = sshll.u32 [#allocation5], 4
      %s32 = int_to_ptr.vmem [resolvable:$true] %s31
      %37 = dma.hbm_to_vmem [thread:$0]  %s2, 256, %s32, [#allocation6], 128, 128, 8
    $region13: #{tpu_custom_call.1} parent=1 // pred_fallthru
      _
    // Predicated region
    $region14: #{tpu_custom_call.1} parent=1 // pred_check
      _
    $region15: #{tpu_custom_call.1} parent=1 // pred_check_branch
      %39 = sbr.rel (0) target = $region17
    $region16: #{tpu_custom_call.1} parent=1 // pred_region
      %s41 = ssub.s32 256, 256
      %42 = vsyncadd [#allocation6], %s41
      %s43 = sshll.u32 [#allocation7], 4
      %s44 = int_to_ptr.vmem [resolvable:$true] %s43
      %49 = dma.hbm_to_vmem [thread:$0]  %s3, 256, %s44, [#allocation6], 128, 128, 8
    $region17: #{tpu_custom_call.1} parent=1 // pred_fallthru
      _
    // Predicated region
    $region18: #{tpu_custom_call.1} parent=1 // pred_check
      _
    $region19: #{tpu_custom_call.1} parent=1 // pred_check_branch
      %51 = sbr.rel (0) target = $region21
    $region20: #{tpu_custom_call.1} parent=1 // pred_region
      %52 = dma.done [#allocation3], 256
    $region21: #{tpu_custom_call.1} parent=1 // pred_fallthru
      _
    // Predicated region
    $region22: #{tpu_custom_call.1} parent=1 // pred_check
      _
    $region23: #{tpu_custom_call.1} parent=1 // pred_check_branch
      %54 = sbr.rel (0) target = $region25
    $region24: #{tpu_custom_call.1} parent=1 // pred_region
      %55 = dma.done [#allocation6], 256
    $region25: #{tpu_custom_call.1} parent=1 // pred_fallthru
      _
    // Predicated region
    $region26: #{tpu_custom_call.1} parent=1 // pred_check
      _
    $region27: #{tpu_custom_call.1} parent=1 // pred_check_branch
      %57 = sbr.rel (0) target = $region29
    $region28: #{tpu_custom_call.1} parent=1 // pred_region
      %58 = dma.done [#allocation6], 256
    $region29: #{tpu_custom_call.1} parent=1 // pred_fallthru
      _
    %v59 = vld [vmem:[#allocation2] sm:$0xff]
    %v60 = vld [vmem:[#allocation2 + $0x8] sm:$0xff]
    %v61 = vmul.f32 %v59, 0.6666667
    %v62 = vmul.f32 %v60, 0.6666667
    %v63 = vld [vmem:[#allocation5] sm:$0xff]
    %v64 = vld [vmem:[#allocation5 + $0x8] sm:$0xff]
    %v65 = vld [vmem:[#allocation7] sm:$0xff]
    %v66 = vld [vmem:[#allocation7 + $0x8] sm:$0xff]
    %vm67 = vcmask 261120
    %v69 = vsel %vm67, %v61, 0
    %v72 = vsel %vm67, %v63, 0
    %74 = vmatprep.subr.mxu0 0.0
    %75 = vmatpush1.xpose.msra.mxu0 0.0
    %76 = vmatprep.subr.mxu0 0.0
    %77 = vmatpush1.xpose.msra.mxu0 0.0
    %78 = vmatprep.subr.mxu0 0.0
    %79 = vmatpush1.xpose.msra.mxu0 0.0
    %80 = vmatprep.subr.mxu0 0.0
    %81 = vmatpush1.xpose.msra.mxu0 0.0
    %82 = vmatprep.subr.mxu0 0.0
    %83 = vmatpush1.xpose.msra.mxu0 0.0
    %84 = vmatprep.subr.mxu0 0.0
    %85 = vmatpush1.xpose.msra.mxu0 0.0
    %86 = vmatprep.subr.mxu0 0.0
    %87 = vmatpush1.xpose.msra.mxu0 0.0
    %88 = vmatprep.subr.mxu0 0.0
    %89 = vmatpush1.xpose.msra.mxu0 0.0
    %90 = vmatprep.subr.mxu0 0.0
    %91 = vmatpush1.xpose.msra.mxu0 0.0
    %92 = vmatprep.subr.mxu0 0.0
    %93 = vmatpush1.xpose.msra.mxu0 0.0
    %94 = vmatprep.subr.mxu0 0.0
    %95 = vmatpush1.xpose.msra.mxu0 0.0
    %96 = vmatprep.subr.mxu0 0.0
    %97 = vmatpush1.xpose.msra.mxu0 0.0
    %98 = vmatprep.subr.mxu0 0.0
    %99 = vmatpush1.xpose.msra.mxu0 0.0
    %100 = vmatprep.subr.mxu0 0.0
    %101 = vmatpush1.xpose.msra.mxu0 0.0
    %102 = vmatprep.subr.mxu0 0.0
    %103 = vmatpush1.xpose.msra.mxu0 0.0
    %104 = vmatprep.subr.mxu0 0.0
    %105 = vmatpush1.xpose.msra.mxu0 %v72
    %106 = vmatprep.subr.mxu0 0.0
    %107 = vmatpush2.xpose.msra.mxu0 0.0
    %108 = vmatprep.subr.mxu0 0.0
    %109 = vmatpush2.xpose.msra.mxu0 0.0
    %110 = vmatprep.subr.mxu0 0.0
    %111 = vmatpush2.xpose.msra.mxu0 0.0
    %112 = vmatprep.subr.mxu0 0.0
    %113 = vmatpush2.xpose.msra.mxu0 0.0
    %114 = vmatprep.subr.mxu0 0.0
    %115 = vmatpush2.xpose.msra.mxu0 0.0
    %116 = vmatprep.subr.mxu0 0.0
    %117 = vmatpush2.xpose.msra.mxu0 0.0
    %118 = vmatprep.subr.mxu0 0.0
    %119 = vmatpush2.xpose.msra.mxu0 0.0
    %120 = vmatprep.subr.mxu0 0.0
    %121 = vmatpush2.xpose.msra.mxu0 0.0
    %122 = vmatprep.subr.mxu0 0.0
    %123 = vmatpush2.xpose.msra.mxu0 0.0
    %124 = vmatprep.subr.mxu0 0.0
    %125 = vmatpush2.xpose.msra.mxu0 0.0
    %126 = vmatprep.subr.mxu0 0.0
    %127 = vmatpush2.xpose.msra.mxu0 0.0
    %128 = vmatprep.subr.mxu0 0.0
    %129 = vmatpush2.xpose.msra.mxu0 0.0
    %130 = vmatprep.subr.mxu0 0.0
    %131 = vmatpush2.xpose.msra.mxu0 0.0
    %132 = vmatprep.subr.mxu0 0.0
    %133 = vmatpush2.xpose.msra.mxu0 0.0
    %134 = vmatprep.subr.mxu0 0.0
    %135 = vmatpush2.xpose.msra.mxu0 0.0
    %136 = vmatprep.subr.mxu0 0.0
    %137 = vmatpush2.xpose.msra.mxu0 0.0
    %138 = vmatprep.mubr.f32.mxu0 0.0
    %139 = vmatmul.mubr.f32.gmra.mxu0 %v69
    %v140 = vpop.f32.mrf.mxu0
    %v141 = vadd.f32 0.0, %v140
    %v142 = vpop.f32.mrf.mxu0
    %143 = vdwg.mxu0
    %v145 = vsel %vm67, %v62, 0
    %v148 = vsel %vm67, %v64, 0
    %150 = vmatprep.subr.mxu0 0.0
    %151 = vmatpush1.xpose.msra.mxu0 0.0
    %152 = vmatprep.subr.mxu0 0.0
    %153 = vmatpush1.xpose.msra.mxu0 0.0
    %154 = vmatprep.subr.mxu0 0.0
    %155 = vmatpush1.xpose.msra.mxu0 0.0
    %156 = vmatprep.subr.mxu0 0.0
    %157 = vmatpush1.xpose.msra.mxu0 0.0
    %158 = vmatprep.subr.mxu0 0.0
    %159 = vmatpush1.xpose.msra.mxu0 0.0
    %160 = vmatprep.subr.mxu0 0.0
    %161 = vmatpush1.xpose.msra.mxu0 0.0
    %162 = vmatprep.subr.mxu0 0.0
    %163 = vmatpush1.xpose.msra.mxu0 0.0
    %164 = vmatprep.subr.mxu0 0.0
    %165 = vmatpush1.xpose.msra.mxu0 0.0
    %166 = vmatprep.subr.mxu0 0.0
    %167 = vmatpush1.xpose.msra.mxu0 0.0
    %168 = vmatprep.subr.mxu0 0.0
    %169 = vmatpush1.xpose.msra.mxu0 0.0
    %170 = vmatprep.subr.mxu0 0.0
    %171 = vmatpush1.xpose.msra.mxu0 0.0
    %172 = vmatprep.subr.mxu0 0.0
    %173 = vmatpush1.xpose.msra.mxu0 0.0
    %174 = vmatprep.subr.mxu0 0.0
    %175 = vmatpush1.xpose.msra.mxu0 0.0
    %176 = vmatprep.subr.mxu0 0.0
    %177 = vmatpush1.xpose.msra.mxu0 0.0
    %178 = vmatprep.subr.mxu0 0.0
    %179 = vmatpush1.xpose.msra.mxu0 0.0
    %180 = vmatprep.subr.mxu0 0.0
    %181 = vmatpush1.xpose.msra.mxu0 %v148
    %182 = vmatprep.subr.mxu0 0.0
    %183 = vmatpush2.xpose.msra.mxu0 0.0
    %184 = vmatprep.subr.mxu0 0.0
    %185 = vmatpush2.xpose.msra.mxu0 0.0
    %186 = vmatprep.subr.mxu0 0.0
    %187 = vmatpush2.xpose.msra.mxu0 0.0
    %188 = vmatprep.subr.mxu0 0.0
    %189 = vmatpush2.xpose.msra.mxu0 0.0
    %190 = vmatprep.subr.mxu0 0.0
    %191 = vmatpush2.xpose.msra.mxu0 0.0
    %192 = vmatprep.subr.mxu0 0.0
    %193 = vmatpush2.xpose.msra.mxu0 0.0
    %194 = vmatprep.subr.mxu0 0.0
    %195 = vmatpush2.xpose.msra.mxu0 0.0
    %196 = vmatprep.subr.mxu0 0.0
    %197 = vmatpush2.xpose.msra.mxu0 0.0
    %198 = vmatprep.subr.mxu0 0.0
    %199 = vmatpush2.xpose.msra.mxu0 0.0
    %200 = vmatprep.subr.mxu0 0.0
    %201 = vmatpush2.xpose.msra.mxu0 0.0
    %202 = vmatprep.subr.mxu0 0.0
    %203 = vmatpush2.xpose.msra.mxu0 0.0
    %204 = vmatprep.subr.mxu0 0.0
    %205 = vmatpush2.xpose.msra.mxu0 0.0
    %206 = vmatprep.subr.mxu0 0.0
    %207 = vmatpush2.xpose.msra.mxu0 0.0
    %208 = vmatprep.subr.mxu0 0.0
    %209 = vmatpush2.xpose.msra.mxu0 0.0
    %210 = vmatprep.subr.mxu0 0.0
    %211 = vmatpush2.xpose.msra.mxu0 0.0
    %212 = vmatprep.subr.mxu0 0.0
    %213 = vmatpush2.xpose.msra.mxu0 0.0
    %214 = vmatprep.mubr.f32.mxu0 0.0
    %215 = vmatmul.mubr.f32.gmra.mxu0 %v145
    %v216 = vpop.f32.mrf.mxu0
    %v217 = vadd.f32 0.0, %v216
    %v218 = vpop.f32.mrf.mxu0
    %219 = vdwg.mxu0
    %vm220 = vcmask 64512
    %v221 = vsel %vm220, %v141, inf
    %222 = vmin.xlane.f32.xlu0 %v221
    %v223 = vpop.xlane.xlu0 %222
    %v224 = vsel %vm220, %v217, inf
    %225 = vmin.xlane.f32.xlu0 %v224
    %v226 = vpop.xlane.xlu0 %225
    %v227 = vsub.f32 %v141, %v223
    %v228 = vsub.f32 %v217, %v226
    %v229 = vmul.f32 %v227, %v227
    %v230 = vmul.f32 %v228, %v228
    %v231 = vsel %vm220, %v229, 0.0
    %232 = vadd.xlane.f32.xlu0 %v231
    %v233 = vpop.xlane.xlu0 %232
    %v234 = vsel %vm220, %v230, 0.0
    %235 = vadd.xlane.f32.xlu0 %v234
    %v236 = vpop.xlane.xlu0 %235
    %v237 = vmax.f32 %v233, 1e-24
    %v238 = vmax.f32 %v236, 1e-24
    %v239 = vrsqrt.pop %v237
    %v240 = vrsqrt.pop %v238
    %v241 = vmul.f32 %v227, %v239
    %v242 = vmul.f32 %v228, %v240
    %v243 = vlaneseq
    %v244 = vand.u32 %v243, 127
    %v245 = vld [vmem:[%s0] sm:$0x1]
    %v246 = vld [vmem:[%s0 + $0x1] sm:$0x1]
    %v247 = vlaneseq
    %v248 = vshrl.u32 %v247, 7
    %v249 = vsub.s32 0, %v248
    %v250 = vrot.slane %v245, %v249
    %v251 = vlaneseq
    %v252 = vshrl.u32 %v251, 7
    %v253 = vsub.s32 0, %v252
    %v254 = vrot.slane %v246, %v253
    %255 = vset.pattern.permute.xlu0 0
    %256 = vperm.xlu0 %255, %v250
    %v257 = vpop.permute.xlu0 %256
    %258 = vset.pattern.permute.xlu0 0
    %259 = vperm.xlu0 %258, %v254
    %v260 = vpop.permute.xlu0 %259
    %vm261 = vcmp.ge.s32.totalorder %v244, %v257
    %vm262 = vcmp.ge.s32.totalorder %v244, %v260
    %v263 = vsel %vm261, -1000000.0, %v241
    %v264 = vsel %vm262, -1000000.0, %v242
    %v265 = vmul.f32 %v263, 1.442695
    %v266 = vpow.pop %v265
    %v267 = vmul.f32 %v264, 1.442695
    %v268 = vpow.pop %v267
    %v269 = vsel %vm220, %v266, 0.0
    %270 = vadd.xlane.f32.xlu0 %v269
    %v271 = vpop.xlane.xlu0 %270
    %v272 = vsel %vm220, %v268, 0.0
    %273 = vadd.xlane.f32.xlu0 %v272
    %v274 = vpop.xlane.xlu0 %273
    %v276 = vsel %vm220, %v266, 0
    %278 = vmatprep.subr.mxu0 0.0
    %279 = vmatpush1.msra.mxu0 0.0
    %280 = vmatprep.subr.mxu0 0.0
    %281 = vmatpush1.msra.mxu0 0.0
    %282 = vmatprep.subr.mxu0 0.0
    %283 = vmatpush1.msra.mxu0 0.0
    %284 = vmatprep.subr.mxu0 0.0
    %285 = vmatpush1.msra.mxu0 0.0
    %286 = vmatprep.subr.mxu0 0.0
    %287 = vmatpush1.msra.mxu0 0.0
    %288 = vmatprep.subr.mxu0 0.0
    %289 = vmatpush1.msra.mxu0 0.0
    %290 = vmatprep.subr.mxu0 0.0
    %291 = vmatpush1.msra.mxu0 0.0
    %292 = vmatprep.subr.mxu0 0.0
    %293 = vmatpush1.msra.mxu0 0.0
    %294 = vmatprep.subr.mxu0 0.0
    %295 = vmatpush1.msra.mxu0 0.0
    %296 = vmatprep.subr.mxu0 0.0
    %297 = vmatpush1.msra.mxu0 0.0
    %298 = vmatprep.subr.mxu0 0.0
    %299 = vmatpush1.msra.mxu0 0.0
    %300 = vmatprep.subr.mxu0 0.0
    %301 = vmatpush1.msra.mxu0 0.0
    %302 = vmatprep.subr.mxu0 0.0
    %303 = vmatpush1.msra.mxu0 0.0
    %304 = vmatprep.subr.mxu0 0.0
    %305 = vmatpush1.msra.mxu0 0.0
    %306 = vmatprep.subr.mxu0 0.0
    %307 = vmatpush1.msra.mxu0 0.0
    %308 = vmatprep.subr.mxu0 0.0
    %309 = vmatpush1.msra.mxu0 %v65
    %310 = vmatprep.subr.mxu0 0.0
    %311 = vmatpush2.msra.mxu0 0.0
    %312 = vmatprep.subr.mxu0 0.0
    %313 = vmatpush2.msra.mxu0 0.0
    %314 = vmatprep.subr.mxu0 0.0
    %315 = vmatpush2.msra.mxu0 0.0
    %316 = vmatprep.subr.mxu0 0.0
    %317 = vmatpush2.msra.mxu0 0.0
    %318 = vmatprep.subr.mxu0 0.0
    %319 = vmatpush2.msra.mxu0 0.0
    %320 = vmatprep.subr.mxu0 0.0
    %321 = vmatpush2.msra.mxu0 0.0
    %322 = vmatprep.subr.mxu0 0.0
    %323 = vmatpush2.msra.mxu0 0.0
    %324 = vmatprep.subr.mxu0 0.0
    %325 = vmatpush2.msra.mxu0 0.0
    %326 = vmatprep.subr.mxu0 0.0
    %327 = vmatpush2.msra.mxu0 0.0
    %328 = vmatprep.subr.mxu0 0.0
    %329 = vmatpush2.msra.mxu0 0.0
    %330 = vmatprep.subr.mxu0 0.0
    %331 = vmatpush2.msra.mxu0 0.0
    %332 = vmatprep.subr.mxu0 0.0
    %333 = vmatpush2.msra.mxu0 0.0
    %334 = vmatprep.subr.mxu0 0.0
    %335 = vmatpush2.msra.mxu0 0.0
    %336 = vmatprep.subr.mxu0 0.0
    %337 = vmatpush2.msra.mxu0 0.0
    %338 = vmatprep.subr.mxu0 0.0
    %339 = vmatpush2.msra.mxu0 0.0
    %340 = vmatprep.subr.mxu0 0.0
    %341 = vmatpush2.msra.mxu0 0.0
    %342 = vmatprep.mubr.f32.mxu0 0.0
    %343 = vmatmul.mubr.f32.gmra.mxu0 %v276
    %v344 = vpop.f32.mrf.mxu0
    %v345 = vadd.f32 0.0, %v344
    %v346 = vpop.f32.mrf.mxu0
    %347 = vdwg.mxu0
    %v349 = vsel %vm220, %v268, 0
    %351 = vmatprep.subr.mxu0 0.0
    %352 = vmatpush1.msra.mxu0 0.0
    %353 = vmatprep.subr.mxu0 0.0
    %354 = vmatpush1.msra.mxu0 0.0
    %355 = vmatprep.subr.mxu0 0.0
    %356 = vmatpush1.msra.mxu0 0.0
    %357 = vmatprep.subr.mxu0 0.0
    %358 = vmatpush1.msra.mxu0 0.0
    %359 = vmatprep.subr.mxu0 0.0
    %360 = vmatpush1.msra.mxu0 0.0
    %361 = vmatprep.subr.mxu0 0.0
    %362 = vmatpush1.msra.mxu0 0.0
    %363 = vmatprep.subr.mxu0 0.0
    %364 = vmatpush1.msra.mxu0 0.0
    %365 = vmatprep.subr.mxu0 0.0
    %366 = vmatpush1.msra.mxu0 0.0
    %367 = vmatprep.subr.mxu0 0.0
    %368 = vmatpush1.msra.mxu0 0.0
    %369 = vmatprep.subr.mxu0 0.0
    %370 = vmatpush1.msra.mxu0 0.0
    %371 = vmatprep.subr.mxu0 0.0
    %372 = vmatpush1.msra.mxu0 0.0
    %373 = vmatprep.subr.mxu0 0.0
    %374 = vmatpush1.msra.mxu0 0.0
    %375 = vmatprep.subr.mxu0 0.0
    %376 = vmatpush1.msra.mxu0 0.0
    %377 = vmatprep.subr.mxu0 0.0
    %378 = vmatpush1.msra.mxu0 0.0
    %379 = vmatprep.subr.mxu0 0.0
    %380 = vmatpush1.msra.mxu0 0.0
    %381 = vmatprep.subr.mxu0 0.0
    %382 = vmatpush1.msra.mxu0 %v66
    %383 = vmatprep.subr.mxu0 0.0
    %384 = vmatpush2.msra.mxu0 0.0
    %385 = vmatprep.subr.mxu0 0.0
    %386 = vmatpush2.msra.mxu0 0.0
    %387 = vmatprep.subr.mxu0 0.0
    %388 = vmatpush2.msra.mxu0 0.0
    %389 = vmatprep.subr.mxu0 0.0
    %390 = vmatpush2.msra.mxu0 0.0
    %391 = vmatprep.subr.mxu0 0.0
    %392 = vmatpush2.msra.mxu0 0.0
    %393 = vmatprep.subr.mxu0 0.0
    %394 = vmatpush2.msra.mxu0 0.0
    %395 = vmatprep.subr.mxu0 0.0
    %396 = vmatpush2.msra.mxu0 0.0
    %397 = vmatprep.subr.mxu0 0.0
    %398 = vmatpush2.msra.mxu0 0.0
    %399 = vmatprep.subr.mxu0 0.0
    %400 = vmatpush2.msra.mxu0 0.0
    %401 = vmatprep.subr.mxu0 0.0
    %402 = vmatpush2.msra.mxu0 0.0
    %403 = vmatprep.subr.mxu0 0.0
    %404 = vmatpush2.msra.mxu0 0.0
    %405 = vmatprep.subr.mxu0 0.0
    %406 = vmatpush2.msra.mxu0 0.0
    %407 = vmatprep.subr.mxu0 0.0
    %408 = vmatpush2.msra.mxu0 0.0
    %409 = vmatprep.subr.mxu0 0.0
    %410 = vmatpush2.msra.mxu0 0.0
    %411 = vmatprep.subr.mxu0 0.0
    %412 = vmatpush2.msra.mxu0 0.0
    %413 = vmatprep.subr.mxu0 0.0
    %414 = vmatpush2.msra.mxu0 0.0
    %415 = vmatprep.mubr.f32.mxu0 0.0
    %416 = vmatmul.mubr.f32.gmra.mxu0 %v349
    %v417 = vpop.f32.mrf.mxu0
    %v418 = vadd.f32 0.0, %v417
    %v419 = vpop.f32.mrf.mxu0
    %420 = vdwg.mxu0
    %v421 = vrcp.pop %v271
    %v422 = vrcp.pop %v274
    %v423 = vmul.f32 %v345, %v421
    %v424 = vmul.f32 %v418, %v422
    %425 = vst.msk [vmem:[#allocation8] sm:$0xff] %vm67, %v423
    %426 = vst.msk [vmem:[#allocation8 + $0x8] sm:$0xff] %vm67, %v424
    // Predicated region
    $region30: #{tpu_custom_call.1} parent=1 // pred_check
      _
    $region31: #{tpu_custom_call.1} parent=1 // pred_check_branch
      %428 = sbr.rel (0) target = $region33
    $region32: #{tpu_custom_call.1} parent=1 // pred_region
      %s430 = ssub.s32 256, 256
      %431 = vsyncadd [#allocation4], %s430
      %s432 = sshll.u32 [#allocation8], 4
      %s433 = int_to_ptr.vmem [resolvable:$true] %s432
      %438 = dma.vmem_to_hbm [thread:$0]  %s433, 256, %s4, [#allocation4], 128, 128, 8
    $region33: #{tpu_custom_call.1} parent=1 // pred_fallthru
      _
    // Predicated region
    $region34: #{tpu_custom_call.1} parent=1 // pred_check
      _
    $region35: #{tpu_custom_call.1} parent=1 // pred_check_branch
      %440 = sbr.rel (0) target = $region37
    $region36: #{tpu_custom_call.1} parent=1 // pred_region
      %441 = dma.done [#allocation4], 256
    $region37: #{tpu_custom_call.1} parent=1 // pred_fallthru
      _
    %442 = vsyncpa [#allocation3], 1
    %443 = vsyncpa [#allocation6], 1
    %444 = vsyncpa [#allocation4], 1

</llo_original>
